<compile_context>
chip_gen: v7x
topology: tpu7x:2x2x1
jax: 0.10.0
libtpu: 0.0.40
codegen_flags: <defaults>
</compile_context>

<pallas_src>
import math

import jax
import jax.numpy as jnp
from jax.experimental import pallas as pl
from jax.experimental.pallas import tpu as pltpu  # noqa: F401  (kept for TPU-specific tuning hooks)

_LANE = 128


def _make_fused_rnn_kernel(num_layers):
    """Build a kernel computing the whole RNNCell stack in one invocation.

    Ref layout (inputs, then output):
      refs[0]                         : cat0   (B, x_n + h_n[0])   == [x | h0[0]]
      refs[1 .. L-1]                  : h0[i]  (B, h_n[i])         for i = 1..L-1
      refs[L]                         : W0     (x_n + h_n[0], Hpad) == vstack(Wih0^T, Whh0^T), N zero-padded
      refs[L+1 .. L+2(L-1)]           : (Wih_i, Whh_i) pairs, zero-padded to lane-dense shapes
      refs[L+1+2(L-1) .. -2]          : b_i    (1, Hpad)           zero-padded combined biases
      refs[-1]                        : out    (L, B, Hpad)        lane-dense stacked hidden states
    """
    L = num_layers

    def kernel(*refs):
        out_ref = refs[-1]
        cat0_ref = refs[0]
        h0_refs = refs[1:L]
        w0_ref = refs[L]
        w_rest = refs[L + 1 : L + 1 + 2 * (L - 1)]
        b_refs = refs[L + 1 + 2 * (L - 1) : -1]

        # ---- layer 0: one fused matmul over the concatenated [x | h0[0]] input.
        h = jnp.tanh(
            jnp.dot(cat0_ref[...], w0_ref[...], preferred_element_type=jnp.float32)
            + b_refs[0][...]
        )
        out_ref[0] = h  # (B, Hpad) lane-dense store

        # ---- layers 1..L-1: previous hidden (already lane-padded with exact
        # zeros beyond h_n[i-1]) drives the ih-path; h0[i] drives the hh-path.
        for i in range(1, L):
            wih_ref = w_rest[2 * (i - 1)]
            whh_ref = w_rest[2 * (i - 1) + 1]
            pre = (
                jnp.dot(h, wih_ref[...], preferred_element_type=jnp.float32)
                + jnp.dot(
                    h0_refs[i - 1][...], whh_ref[...],
                    preferred_element_type=jnp.float32,
                )
                + b_refs[i][...]
            )
            h = jnp.tanh(pre)
            out_ref[i] = h

    return kernel


class ModelDefPallas:
    """Stack of tanh-RNNCell layers (ModelDef with rnn_type='RNN'), parameters
    initialized PyTorch-style U(-1/sqrt(h), 1/sqrt(h)), forward fused into a
    single Pallas kernel."""

    def __init__(self, x_n, h_n, key):
        self.x_n = x_n
        self.h_n = list(h_n)
        L = len(self.h_n)
        self._L = L
        # Lane-dense hidden width (multiple of 128) shared by all layers.
        self._Hpad = _LANE * max(1, -(-max(self.h_n) // _LANE))
        Hpad = self._Hpad

        # ---- raw parameters (kept for the pure-JAX reference / semantics).
        self.params = []
        in_n = x_n
        for hid in self.h_n:
            k1, k2, k3, k4, key = jax.random.split(key, 5)
            bound = 1.0 / math.sqrt(hid)
            # PyTorch stores weight_ih as (hid, in_n); we keep the transposed
            # (in_n, hid) layout so the kernel does x @ W directly.
            w_ih_t = jax.random.uniform(k1, (in_n, hid), jnp.float32, -bound, bound)
            w_hh_t = jax.random.uniform(k2, (hid, hid), jnp.float32, -bound, bound)
            b_ih = jax.random.uniform(k3, (hid,), jnp.float32, -bound, bound)
            b_hh = jax.random.uniform(k4, (hid,), jnp.float32, -bound, bound)
            self.params.append((w_ih_t, w_hh_t, (b_ih + b_hh)[None, :]))
            in_n = hid

        # ---- pre-packed, zero-padded kernel parameters (built once).
        def pad_cols(w):
            return jnp.pad(w, ((0, 0), (0, Hpad - w.shape[1])))

        w_ih_t0, w_hh_t0, _ = self.params[0]
        # Layer 0: fused [Wih^T ; Whh^T], lane dim zero-padded to Hpad.
        self._w0 = pad_cols(jnp.concatenate([w_ih_t0, w_hh_t0], axis=0))
        self._w_rest = []
        for i in range(1, L):
            w_ih_t, w_hh_t, _ = self.params[i]
            in_n_i = self.h_n[i - 1]
            # ih weight padded with zero rows (beyond h_n[i-1]) and zero cols
            # (beyond h_n[i]) so the padded previous hidden state can be used
            # directly without any in-kernel slice/concat.
            wih_pad = jnp.pad(w_ih_t, ((0, Hpad - in_n_i), (0, Hpad - self.h_n[i])))
            whh_pad = pad_cols(w_hh_t)
            self._w_rest += [wih_pad, whh_pad]
        self._b_pad = [pad_cols(b) for (_, _, b) in self.params]

        self._kernel = _make_fused_rnn_kernel(L)

    def forward(self, x, h0):
        """x: (B, x_n), h0: list of (B, h_n[i]).  Returns the list of new hidden
        states, matching ModelDef.forward with rnn_type='RNN'."""
        B = x.shape[0]
        L, Hpad = self._L, self._Hpad

        cat0 = jnp.concatenate([x, h0[0]], axis=1)  # (B, x_n + h_n[0])
        inputs = (
            [cat0]
            + list(h0[1:])
            + [self._w0]
            + list(self._w_rest)
            + list(self._b_pad)
        )

        def full_spec(a):
            nd = a.ndim
            return pl.BlockSpec(a.shape, lambda: (0,) * nd)

        out = pl.pallas_call(
            self._kernel,
            out_shape=jax.ShapeDtypeStruct((L, B, Hpad), jnp.float32),
            grid=(),
            in_specs=[full_spec(a) for a in inputs],
            out_specs=pl.BlockSpec((L, B, Hpad), lambda: (0, 0, 0)),
        )(*inputs)

        return [out[i, :, : self.h_n[i]] for i in range(L)]

    def init_hidden(self, bsz):
        return [jnp.zeros((bsz, h), jnp.float32) for h in self.h_n]


def _reference_forward(model, x, h0):
    """Pure-JAX reference of the same forward (for correctness check)."""
    hn = []
    for i, (w_ih_t, w_hh_t, b) in enumerate(model.params):
        h_new = jnp.tanh(x @ w_ih_t + h0[i] @ w_hh_t + b)
        hn.append(h_new)
        x = h_new
    return hn


if __name__ == "__main__":
    key = jax.random.PRNGKey(0)
    k_param, k_x, k_h = jax.random.split(key, 3)

    # Small shapes consistent with the module: batch=2, x_n=16, h_n=[32, 8].
    B, x_n = 2, 16
    h_n = [32, 8]

    model = ModelDefPallas(x_n, h_n, k_param)
    x = jax.random.normal(k_x, (B, x_n), jnp.float32)
    # Use non-zero initial hidden states so the W_hh path is exercised too.
    h0 = [
        jax.random.normal(jax.random.fold_in(k_h, i), (B, h), jnp.float32)
        for i, h in enumerate(h_n)
    ]

    hn = model.forward(x, h0)
    hn = [jax.block_until_ready(h) for h in hn]

    # Sanity check against the pure-JAX reference.
    ref = _reference_forward(model, x, h0)
    for got, want in zip(hn, ref):
        assert got.shape == want.shape
        assert jnp.allclose(got, want, atol=1e-5), "mismatch vs reference"

    # Also check with the module's own zero init_hidden (default usage).
    h0z = model.init_hidden(B)
    hn_z = [jax.block_until_ready(h) for h in model.forward(x, h0z)]
    ref_z = _reference_forward(model, x, h0z)
    for got, want in zip(hn_z, ref_z):
        assert jnp.allclose(got, want, atol=1e-5), "mismatch vs reference (zero h0)"

    print("KERNEL_OK")
</pallas_src>

<mosaic_0001>
module attributes {stable_mosaic.version = 11 : i64} {
  func.func @kernel(%arg0: memref<2x48xf32, #tpu.memory_space<vmem>>, %arg1: memref<2x8xf32, #tpu.memory_space<vmem>>, %arg2: memref<48x128xf32, #tpu.memory_space<vmem>>, %arg3: memref<128x128xf32, #tpu.memory_space<vmem>>, %arg4: memref<8x128xf32, #tpu.memory_space<vmem>>, %arg5: memref<1x128xf32, #tpu.memory_space<vmem>>, %arg6: memref<1x128xf32, #tpu.memory_space<vmem>>, %arg7: memref<2x2x128xf32, #tpu.memory_space<vmem>>) attributes {dimension_semantics = [], scalar_prefetch = 0 : i64, scratch_operands = 0 : i64, tpu.core_type = #tpu.core_type<tc>} {
    %c0 = arith.constant 0 : index
    %c0_0 = arith.constant 0 : index
    %0 = vector.load %arg0[%c0, %c0_0] : memref<2x48xf32, #tpu.memory_space<vmem>>, vector<2x48xf32>
    %c0_1 = arith.constant 0 : index
    %c0_2 = arith.constant 0 : index
    %1 = vector.load %arg2[%c0_1, %c0_2] : memref<48x128xf32, #tpu.memory_space<vmem>>, vector<48x128xf32>
    %cst = arith.constant dense<0.000000e+00> : vector<2x128xf32>
    %2 = tpu.matmul %0, %1, %cst {dimension_numbers = #tpu.dot_dimension_numbers<[1], [0], [0], [1], [0, 0, 1, 1], [], []>} : vector<2x48xf32>, vector<48x128xf32>, vector<2x128xf32> -> vector<2x128xf32>
    %c0_3 = arith.constant 0 : index
    %c0_4 = arith.constant 0 : index
    %3 = vector.load %arg5[%c0_3, %c0_4] : memref<1x128xf32, #tpu.memory_space<vmem>>, vector<1x128xf32>
    %4 = vector.broadcast %3 : vector<1x128xf32> to vector<2x128xf32>
    %5 = arith.addf %2, %4 : vector<2x128xf32>
    %6 = math.tanh %5 : vector<2x128xf32>
    %c0_5 = arith.constant 0 : index
    %c0_6 = arith.constant 0 : index
    %c0_7 = arith.constant 0 : index
    %7 = vector.load %arg7[%c0_5, %c0_6, %c0_7] : memref<2x2x128xf32, #tpu.memory_space<vmem>>, vector<1x2x128xf32>
    %8 = vector.shape_cast %7 : vector<1x2x128xf32> to vector<2x128xf32>
    %9 = vector.shape_cast %6 : vector<2x128xf32> to vector<1x2x128xf32>
    tpu.vector_store %arg7[%c0_5, %c0_6, %c0_7], %9 {strides = array<i32>} : memref<2x2x128xf32, #tpu.memory_space<vmem>>, vector<1x2x128xf32>,
    %c0_8 = arith.constant 0 : index
    %c0_9 = arith.constant 0 : index
    %10 = vector.load %arg3[%c0_8, %c0_9] : memref<128x128xf32, #tpu.memory_space<vmem>>, vector<128x128xf32>
    %cst_10 = arith.constant dense<0.000000e+00> : vector<2x128xf32>
    %11 = tpu.matmul %6, %10, %cst_10 {dimension_numbers = #tpu.dot_dimension_numbers<[1], [0], [0], [1], [0, 0, 1, 1], [], []>} : vector<2x128xf32>, vector<128x128xf32>, vector<2x128xf32> -> vector<2x128xf32>
    %c0_11 = arith.constant 0 : index
    %c0_12 = arith.constant 0 : index
    %12 = vector.load %arg1[%c0_11, %c0_12] : memref<2x8xf32, #tpu.memory_space<vmem>>, vector<2x8xf32>
    %c0_13 = arith.constant 0 : index
    %c0_14 = arith.constant 0 : index
    %13 = vector.load %arg4[%c0_13, %c0_14] : memref<8x128xf32, #tpu.memory_space<vmem>>, vector<8x128xf32>
    %cst_15 = arith.constant dense<0.000000e+00> : vector<2x128xf32>
    %14 = tpu.matmul %12, %13, %cst_15 {dimension_numbers = #tpu.dot_dimension_numbers<[1], [0], [0], [1], [0, 0, 1, 1], [], []>} : vector<2x8xf32>, vector<8x128xf32>, vector<2x128xf32> -> vector<2x128xf32>
    %15 = arith.addf %11, %14 : vector<2x128xf32>
    %c0_16 = arith.constant 0 : index
    %c0_17 = arith.constant 0 : index
    %16 = vector.load %arg6[%c0_16, %c0_17] : memref<1x128xf32, #tpu.memory_space<vmem>>, vector<1x128xf32>
    %17 = vector.broadcast %16 : vector<1x128xf32> to vector<2x128xf32>
    %18 = arith.addf %15, %17 : vector<2x128xf32>
    %19 = math.tanh %18 : vector<2x128xf32>
    %c1 = arith.constant 1 : index
    %c0_18 = arith.constant 0 : index
    %c0_19 = arith.constant 0 : index
    %20 = vector.load %arg7[%c1, %c0_18, %c0_19] : memref<2x2x128xf32, #tpu.memory_space<vmem>>, vector<1x2x128xf32>
    %21 = vector.shape_cast %20 : vector<1x2x128xf32> to vector<2x128xf32>
    %22 = vector.shape_cast %19 : vector<2x128xf32> to vector<1x2x128xf32>
    tpu.vector_store %arg7[%c1, %c0_18, %c0_19], %22 {strides = array<i32>} : memref<2x2x128xf32, #tpu.memory_space<vmem>>, vector<1x2x128xf32>,
    return
  }
}

</mosaic_0001>

<llo_original>
// kernel: tpu_custom_call.1
$region0: #{tpu_custom_call.1}
  #allocation0 [shape = 'u32[]', space=smem, size = 0x4, offset = 0x4, fixed_abs, tag = 'smem constant byte address 0x4 - core index']
  #allocation1 [shape = 'u32[144,128]{1,0:T(1,128)}', space=vmem, size = 0x12000, scoped, tag = 'internal scratch']
  %s0 = inlined_call_operand.hbm [shape: f32[2,48], index: 0, kind: input, shape index: {}]
  %s1 = inlined_call_operand.vmem [shape: f32[2,8], index: 1, kind: input, shape index: {}]
  %s2 = inlined_call_operand.hbm [shape: f32[48,128], index: 2, kind: input, shape index: {}]
  %s3 = inlined_call_operand.hbm [shape: f32[128,128], index: 3, kind: input, shape index: {}]
  %s4 = inlined_call_operand.vmem [shape: f32[8,128], index: 4, kind: input, shape index: {}]
  %s5 = inlined_call_operand.vmem [shape: f32[1,128], index: 5, kind: input, shape index: {}]
  %s6 = inlined_call_operand.vmem [shape: f32[1,128], index: 6, kind: input, shape index: {}]
  %s7 = inlined_call_operand.hbm [shape: f32[2,2,128], index: 7, kind: output, shape index: {}]
  %s8 = sld [smem:[#allocation0]]
  $region50: #{tpu_custom_call.1} parent=0
    _
  %s10 = ssub.s32 1, %s8
  %s11 = scalar_select 0, %s10, %s8
  $region1: #{tpu_custom_call.1} parent=0
    #allocation2 [shape = 'u8[1024]{0}', space=vmem, size = 0x400, scoped, tag = 'input window, operand 0, single buffered']
    #allocation3 [shape = 's32[1]{0}', space=sflag, size = 0x4, scoped, tag = 'scoped memory for tpu_custom_call.1']
    #allocation4 [shape = 's32[1]{0}', space=sflag, size = 0x4, scoped, tag = 'scoped memory for tpu_custom_call.1']
    #allocation5 [shape = 'u8[24576]{0}', space=vmem, size = 0x6000, scoped, tag = 'input window, operand 2, single buffered']
    #allocation6 [shape = 's32[1]{0}', space=sflag, size = 0x4, scoped, tag = 'scoped memory for tpu_custom_call.1']
    #allocation7 [shape = 'u8[65536]{0}', space=vmem, size = 0x10000, scoped, tag = 'input window, operand 3, single buffered']
    #allocation8 [shape = 'u8[2048]{0}', space=vmem, size = 0x800, scoped, tag = 'output window, operand 0, single buffered']
    %12 = vsyncpa [#allocation3], 0
    %13 = vsyncpa [#allocation6], 0
    %14 = vsyncpa [#allocation4], 0
    // Predicated region
    $region2: #{tpu_custom_call.1} parent=1 // pred_check
      _
    $region3: #{tpu_custom_call.1} parent=1 // pred_check_branch
      %16 = sbr.rel (0) target = $region5
    $region4: #{tpu_custom_call.1} parent=1 // pred_region
      %s18 = ssub.s32 32, 32
      %19 = vsyncadd [#allocation3], %s18
      %s21 = sshll.u32 [#allocation2], 4
      %s22 = int_to_ptr.vmem [resolvable:$true] %s21
      %24 = dma.hbm_to_vmem [thread:$0]  %s0, 32, %s22, [#allocation3]
    $region5: #{tpu_custom_call.1} parent=1 // pred_fallthru
      _
    // Predicated region
    $region6: #{tpu_custom_call.1} parent=1 // pred_check
      _
    $region7: #{tpu_custom_call.1} parent=1 // pred_check_branch
      %26 = sbr.rel (0) target = $region9
    $region8: #{tpu_custom_call.1} parent=1 // pred_region
      _
    $region9: #{tpu_custom_call.1} parent=1 // pred_fallthru
      _
    // Predicated region
    $region10: #{tpu_custom_call.1} parent=1 // pred_check
      _
    $region11: #{tpu_custom_call.1} parent=1 // pred_check_branch
      %28 = sbr.rel (0) target = $region13
    $region12: #{tpu_custom_call.1} parent=1 // pred_region
      %s30 = ssub.s32 768, 768
      %31 = vsyncadd [#allocation6], %s30
      %s32 = sshll.u32 [#allocation5], 4
      %s33 = int_to_ptr.vmem [resolvable:$true] %s32
      %38 = dma.hbm_to_vmem [thread:$0]  %s2, 768, %s33, [#allocation6], 128, 128, 8
    $region13: #{tpu_custom_call.1} parent=1 // pred_fallthru
      _
    // Predicated region
    $region14: #{tpu_custom_call.1} parent=1 // pred_check
      _
    $region15: #{tpu_custom_call.1} parent=1 // pred_check_branch
      %40 = sbr.rel (0) target = $region17
    $region16: #{tpu_custom_call.1} parent=1 // pred_region
      %s42 = ssub.s32 2048, 2048
      %43 = vsyncadd [#allocation6], %s42
      %s44 = sshll.u32 [#allocation7], 4
      %s45 = int_to_ptr.vmem [resolvable:$true] %s44
      %50 = dma.hbm_to_vmem [thread:$0]  %s3, 2048, %s45, [#allocation6], 128, 128, 8
    $region17: #{tpu_custom_call.1} parent=1 // pred_fallthru
      _
    // Predicated region
    $region18: #{tpu_custom_call.1} parent=1 // pred_check
      _
    $region19: #{tpu_custom_call.1} parent=1 // pred_check_branch
      %52 = sbr.rel (0) target = $region21
    $region20: #{tpu_custom_call.1} parent=1 // pred_region
      _
    $region21: #{tpu_custom_call.1} parent=1 // pred_fallthru
      _
    // Predicated region
    $region22: #{tpu_custom_call.1} parent=1 // pred_check
      _
    $region23: #{tpu_custom_call.1} parent=1 // pred_check_branch
      %54 = sbr.rel (0) target = $region25
    $region24: #{tpu_custom_call.1} parent=1 // pred_region
      _
    $region25: #{tpu_custom_call.1} parent=1 // pred_fallthru
      _
    // Predicated region
    $region26: #{tpu_custom_call.1} parent=1 // pred_check
      _
    $region27: #{tpu_custom_call.1} parent=1 // pred_check_branch
      %56 = sbr.rel (0) target = $region29
    $region28: #{tpu_custom_call.1} parent=1 // pred_region
      _
    $region29: #{tpu_custom_call.1} parent=1 // pred_fallthru
      _
    // Predicated region
    $region30: #{tpu_custom_call.1} parent=1 // pred_check
      _
    $region31: #{tpu_custom_call.1} parent=1 // pred_check_branch
      %58 = sbr.rel (0) target = $region33
    $region32: #{tpu_custom_call.1} parent=1 // pred_region
      %59 = dma.done [#allocation3], 32
    $region33: #{tpu_custom_call.1} parent=1 // pred_fallthru
      _
    // Predicated region
    $region34: #{tpu_custom_call.1} parent=1 // pred_check
      _
    $region35: #{tpu_custom_call.1} parent=1 // pred_check_branch
      %61 = sbr.rel (0) target = $region37
    $region36: #{tpu_custom_call.1} parent=1 // pred_region
      %62 = dma.done [#allocation6], 768
    $region37: #{tpu_custom_call.1} parent=1 // pred_fallthru
      _
    // Predicated region
    $region38: #{tpu_custom_call.1} parent=1 // pred_check
      _
    $region39: #{tpu_custom_call.1} parent=1 // pred_check_branch
      %64 = sbr.rel (0) target = $region41
    $region40: #{tpu_custom_call.1} parent=1 // pred_region
      %65 = dma.done [#allocation6], 2048
    $region41: #{tpu_custom_call.1} parent=1 // pred_fallthru
      _
    %v66 = vld [vmem:[#allocation2] sm:$0x3]
    %v67 = vld [vmem:[#allocation5] sm:$0xff]
    %v68 = vld [vmem:[#allocation5 + $0x8] sm:$0xff]
    %v69 = vld [vmem:[#allocation5 + $0x10] sm:$0xff]
    %v70 = vld [vmem:[#allocation5 + $0x18] sm:$0xff]
    %v71 = vld [vmem:[#allocation5 + $0x20] sm:$0xff]
    %v72 = vld [vmem:[#allocation5 + $0x28] sm:$0xff]
    %v73 = vld [vmem:[%s5] sm:$0x1]
    %v75 = vlaneseq
    %v76 = vshrl.u32 %v75, 7
    %v77 = vsub.s32 0, %v76
    %v78 = vrot.slane %v73, %v77
    %vm80 = vcmask 392192
    %v82 = vsel %vm80, %v66, 0
    %84 = vmatprep.subr.mxu0 0.0
    %85 = vmatpush1.msra.mxu0 %v67
    %86 = vmatprep.subr.mxu0 0.0
    %87 = vmatpush1.msra.mxu0 %v68
    %88 = vmatprep.subr.mxu0 0.0
    %89 = vmatpush1.msra.mxu0 %v69
    %90 = vmatprep.subr.mxu0 0.0
    %91 = vmatpush1.msra.mxu0 %v70
    %92 = vmatprep.subr.mxu0 0.0
    %93 = vmatpush1.msra.mxu0 %v71
    %94 = vmatprep.subr.mxu0 0.0
    %95 = vmatpush1.msra.mxu0 %v72
    %96 = vmatprep.subr.mxu0 0.0
    %97 = vmatpush1.msra.mxu0 0.0
    %98 = vmatprep.subr.mxu0 0.0
    %99 = vmatpush1.msra.mxu0 0.0
    %100 = vmatprep.subr.mxu0 0.0
    %101 = vmatpush1.msra.mxu0 0.0
    %102 = vmatprep.subr.mxu0 0.0
    %103 = vmatpush1.msra.mxu0 0.0
    %104 = vmatprep.subr.mxu0 0.0
    %105 = vmatpush1.msra.mxu0 0.0
    %106 = vmatprep.subr.mxu0 0.0
    %107 = vmatpush1.msra.mxu0 0.0
    %108 = vmatprep.subr.mxu0 0.0
    %109 = vmatpush1.msra.mxu0 0.0
    %110 = vmatprep.subr.mxu0 0.0
    %111 = vmatpush1.msra.mxu0 0.0
    %112 = vmatprep.subr.mxu0 0.0
    %113 = vmatpush1.msra.mxu0 0.0
    %114 = vmatprep.subr.mxu0 0.0
    %115 = vmatpush1.msra.mxu0 0.0
    %116 = vmatprep.subr.mxu0 0.0
    %117 = vmatpush1.msra.mxu0 0.0
    %118 = vmatprep.subr.mxu0 0.0
    %119 = vmatpush1.msra.mxu0 0.0
    %120 = vmatprep.subr.mxu0 0.0
    %121 = vmatpush1.msra.mxu0 0.0
    %122 = vmatprep.subr.mxu0 0.0
    %123 = vmatpush1.msra.mxu0 0.0
    %124 = vmatprep.subr.mxu0 0.0
    %125 = vmatpush1.msra.mxu0 0.0
    %126 = vmatprep.subr.mxu0 0.0
    %127 = vmatpush1.msra.mxu0 0.0
    %128 = vmatprep.subr.mxu0 0.0
    %129 = vmatpush1.msra.mxu0 0.0
    %130 = vmatprep.subr.mxu0 0.0
    %131 = vmatpush1.msra.mxu0 0.0
    %132 = vmatprep.subr.mxu0 0.0
    %133 = vmatpush1.msra.mxu0 0.0
    %134 = vmatprep.subr.mxu0 0.0
    %135 = vmatpush1.msra.mxu0 0.0
    %136 = vmatprep.subr.mxu0 0.0
    %137 = vmatpush1.msra.mxu0 0.0
    %138 = vmatprep.subr.mxu0 0.0
    %139 = vmatpush1.msra.mxu0 0.0
    %140 = vmatprep.subr.mxu0 0.0
    %141 = vmatpush1.msra.mxu0 0.0
    %142 = vmatprep.subr.mxu0 0.0
    %143 = vmatpush1.msra.mxu0 0.0
    %144 = vmatprep.subr.mxu0 0.0
    %145 = vmatpush1.msra.mxu0 0.0
    %146 = vmatprep.subr.mxu0 0.0
    %147 = vmatpush1.msra.mxu0 0.0
    %148 = vmatprep.mubr.f32.mxu0 0.0
    %149 = vmatmul.mubr.f32.gmra.mrb[0].mxu0 %v82
    %v150 = vpop.f32.mrb[0].mxu0
    %v151 = vadd.f32 %v78, %v150
    %v152 = vpop.f32.mrb[0].mxu0
    %153 = vdwg.mxu0
    %v154 = vtanh.pop %v151
    %155 = vst [vmem:[#allocation8] sm:$0x3] %v154
    %v156 = vld [vmem:[#allocation7] sm:$0xff]
    %v157 = vld [vmem:[#allocation7 + $0x8] sm:$0xff]
    %v158 = vld [vmem:[#allocation7 + $0x10] sm:$0xff]
    %v159 = vld [vmem:[#allocation7 + $0x18] sm:$0xff]
    %v160 = vld [vmem:[#allocation7 + $0x20] sm:$0xff]
    %v161 = vld [vmem:[#allocation7 + $0x28] sm:$0xff]
    %v162 = vld [vmem:[#allocation7 + $0x30] sm:$0xff]
    %v163 = vld [vmem:[#allocation7 + $0x38] sm:$0xff]
    %v164 = vld [vmem:[#allocation7 + $0x40] sm:$0xff]
    %v165 = vld [vmem:[#allocation7 + $0x48] sm:$0xff]
    %v166 = vld [vmem:[#allocation7 + $0x50] sm:$0xff]
    %v167 = vld [vmem:[#allocation7 + $0x58] sm:$0xff]
    %v168 = vld [vmem:[#allocation7 + $0x60] sm:$0xff]
    %v169 = vld [vmem:[#allocation7 + $0x68] sm:$0xff]
    %v170 = vld [vmem:[#allocation7 + $0x70] sm:$0xff]
    %v171 = vld [vmem:[#allocation7 + $0x78] sm:$0xff]
    %v172 = vld [vmem:[%s1] sm:$0x3]
    %v173 = vld [vmem:[%s4] sm:$0xff]
    %vm174 = vcmask 64512
    %v176 = vsel %vm174, %v172, 0
    %178 = vmatprep.subr.mxu0 0.0
    %179 = vmatpush1.msra.mxu0 %v173
    %180 = vmatprep.subr.mxu0 0.0
    %181 = vmatpush1.msra.mxu0 0.0
    %182 = vmatprep.subr.mxu0 0.0
    %183 = vmatpush1.msra.mxu0 0.0
    %184 = vmatprep.subr.mxu0 0.0
    %185 = vmatpush1.msra.mxu0 0.0
    %186 = vmatprep.subr.mxu0 0.0
    %187 = vmatpush1.msra.mxu0 0.0
    %188 = vmatprep.subr.mxu0 0.0
    %189 = vmatpush1.msra.mxu0 0.0
    %190 = vmatprep.subr.mxu0 0.0
    %191 = vmatpush1.msra.mxu0 0.0
    %192 = vmatprep.subr.mxu0 0.0
    %193 = vmatpush1.msra.mxu0 0.0
    %194 = vmatprep.subr.mxu0 0.0
    %195 = vmatpush1.msra.mxu0 0.0
    %196 = vmatprep.subr.mxu0 0.0
    %197 = vmatpush1.msra.mxu0 0.0
    %198 = vmatprep.subr.mxu0 0.0
    %199 = vmatpush1.msra.mxu0 0.0
    %200 = vmatprep.subr.mxu0 0.0
    %201 = vmatpush1.msra.mxu0 0.0
    %202 = vmatprep.subr.mxu0 0.0
    %203 = vmatpush1.msra.mxu0 0.0
    %204 = vmatprep.subr.mxu0 0.0
    %205 = vmatpush1.msra.mxu0 0.0
    %206 = vmatprep.subr.mxu0 0.0
    %207 = vmatpush1.msra.mxu0 0.0
    %208 = vmatprep.subr.mxu0 0.0
    %209 = vmatpush1.msra.mxu0 0.0
    %210 = vmatprep.subr.mxu0 0.0
    %211 = vmatpush1.msra.mxu0 0.0
    %212 = vmatprep.subr.mxu0 0.0
    %213 = vmatpush1.msra.mxu0 0.0
    %214 = vmatprep.subr.mxu0 0.0
    %215 = vmatpush1.msra.mxu0 0.0
    %216 = vmatprep.subr.mxu0 0.0
    %217 = vmatpush1.msra.mxu0 0.0
    %218 = vmatprep.subr.mxu0 0.0
    %219 = vmatpush1.msra.mxu0 0.0
    %220 = vmatprep.subr.mxu0 0.0
    %221 = vmatpush1.msra.mxu0 0.0
    %222 = vmatprep.subr.mxu0 0.0
    %223 = vmatpush1.msra.mxu0 0.0
    %224 = vmatprep.subr.mxu0 0.0
    %225 = vmatpush1.msra.mxu0 0.0
    %226 = vmatprep.subr.mxu0 0.0
    %227 = vmatpush1.msra.mxu0 0.0
    %228 = vmatprep.subr.mxu0 0.0
    %229 = vmatpush1.msra.mxu0 0.0
    %230 = vmatprep.subr.mxu0 0.0
    %231 = vmatpush1.msra.mxu0 0.0
    %232 = vmatprep.subr.mxu0 0.0
    %233 = vmatpush1.msra.mxu0 0.0
    %234 = vmatprep.subr.mxu0 0.0
    %235 = vmatpush1.msra.mxu0 0.0
    %236 = vmatprep.subr.mxu0 0.0
    %237 = vmatpush1.msra.mxu0 0.0
    %238 = vmatprep.subr.mxu0 0.0
    %239 = vmatpush1.msra.mxu0 0.0
    %240 = vmatprep.subr.mxu0 0.0
    %241 = vmatpush1.msra.mxu0 0.0
    %242 = vmatprep.mubr.f32.mxu0 0.0
    %243 = vmatmul.mubr.f32.gmra.mrb[0].mxu0 %v176
    %v244 = vpop.f32.mrb[0].mxu0
    %v245 = vadd.f32 0.0, %v244
    %v246 = vpop.f32.mrb[0].mxu0
    %247 = vdwg.mxu0
    %248 = vmatprep.subr.mxu0 0.0
    %249 = vmatpush1.msra.mxu0 %v156
    %250 = vmatprep.subr.mxu0 0.0
    %251 = vmatpush1.msra.mxu0 %v157
    %252 = vmatprep.subr.mxu0 0.0
    %253 = vmatpush1.msra.mxu0 %v158
    %254 = vmatprep.subr.mxu0 0.0
    %255 = vmatpush1.msra.mxu0 %v159
    %256 = vmatprep.subr.mxu0 0.0
    %257 = vmatpush1.msra.mxu0 %v160
    %258 = vmatprep.subr.mxu0 0.0
    %259 = vmatpush1.msra.mxu0 %v161
    %260 = vmatprep.subr.mxu0 0.0
    %261 = vmatpush1.msra.mxu0 %v162
    %262 = vmatprep.subr.mxu0 0.0
    %263 = vmatpush1.msra.mxu0 %v163
    %264 = vmatprep.subr.mxu0 0.0
    %265 = vmatpush1.msra.mxu0 %v164
    %266 = vmatprep.subr.mxu0 0.0
    %267 = vmatpush1.msra.mxu0 %v165
    %268 = vmatprep.subr.mxu0 0.0
    %269 = vmatpush1.msra.mxu0 %v166
    %270 = vmatprep.subr.mxu0 0.0
    %271 = vmatpush1.msra.mxu0 %v167
    %272 = vmatprep.subr.mxu0 0.0
    %273 = vmatpush1.msra.mxu0 %v168
    %274 = vmatprep.subr.mxu0 0.0
    %275 = vmatpush1.msra.mxu0 %v169
    %276 = vmatprep.subr.mxu0 0.0
    %277 = vmatpush1.msra.mxu0 %v170
    %278 = vmatprep.subr.mxu0 0.0
    %279 = vmatpush1.msra.mxu0 %v171
    %280 = vmatprep.subr.mxu0 0.0
    %281 = vmatpush1.msra.mxu0 0.0
    %282 = vmatprep.subr.mxu0 0.0
    %283 = vmatpush1.msra.mxu0 0.0
    %284 = vmatprep.subr.mxu0 0.0
    %285 = vmatpush1.msra.mxu0 0.0
    %286 = vmatprep.subr.mxu0 0.0
    %287 = vmatpush1.msra.mxu0 0.0
    %288 = vmatprep.subr.mxu0 0.0
    %289 = vmatpush1.msra.mxu0 0.0
    %290 = vmatprep.subr.mxu0 0.0
    %291 = vmatpush1.msra.mxu0 0.0
    %292 = vmatprep.subr.mxu0 0.0
    %293 = vmatpush1.msra.mxu0 0.0
    %294 = vmatprep.subr.mxu0 0.0
    %295 = vmatpush1.msra.mxu0 0.0
    %296 = vmatprep.subr.mxu0 0.0
    %297 = vmatpush1.msra.mxu0 0.0
    %298 = vmatprep.subr.mxu0 0.0
    %299 = vmatpush1.msra.mxu0 0.0
    %300 = vmatprep.subr.mxu0 0.0
    %301 = vmatpush1.msra.mxu0 0.0
    %302 = vmatprep.subr.mxu0 0.0
    %303 = vmatpush1.msra.mxu0 0.0
    %304 = vmatprep.subr.mxu0 0.0
    %305 = vmatpush1.msra.mxu0 0.0
    %306 = vmatprep.subr.mxu0 0.0
    %307 = vmatpush1.msra.mxu0 0.0
    %308 = vmatprep.subr.mxu0 0.0
    %309 = vmatpush1.msra.mxu0 0.0
    %310 = vmatprep.subr.mxu0 0.0
    %311 = vmatpush1.msra.mxu0 0.0
    %312 = vmatprep.mubr.f32.mxu0 0.0
    %313 = vmatmul.mubr.f32.gmra.mrb[0].mxu0 %v154
    %v314 = vpop.f32.mrb[0].mxu0
    %v315 = vadd.f32 %v245, %v314
    %v316 = vpop.f32.mrb[0].mxu0
    %317 = vdwg.mxu0
    %v318 = vld [vmem:[%s6] sm:$0x1]
    %v320 = vlaneseq
    %v321 = vshrl.u32 %v320, 7
    %v322 = vsub.s32 0, %v321
    %v323 = vrot.slane %v318, %v322
    %v325 = vadd.f32 %v315, %v323
    %v326 = vtanh.pop %v325
    %s327 = scalar_lea.vmem [#allocation8], 2
    %328 = vst [vmem:[%s327] sm:$0x3] %v326
    // Predicated region
    $region42: #{tpu_custom_call.1} parent=1 // pred_check
      _
    $region43: #{tpu_custom_call.1} parent=1 // pred_check_branch
      %330 = sbr.rel (0) target = $region45
    $region44: #{tpu_custom_call.1} parent=1 // pred_region
      %s332 = ssub.s32 64, 64
      %333 = vsyncadd [#allocation4], %s332
      %s334 = sshll.u32 [#allocation8], 4
      %s335 = int_to_ptr.vmem [resolvable:$true] %s334
      %340 = dma.vmem_to_hbm [thread:$0]  %s335, 64, %s7, [#allocation4], 32, 32, 2
    $region45: #{tpu_custom_call.1} parent=1 // pred_fallthru
      _
    // Predicated region
    $region46: #{tpu_custom_call.1} parent=1 // pred_check
      _
    $region47: #{tpu_custom_call.1} parent=1 // pred_check_branch
      %342 = sbr.rel (0) target = $region49
    $region48: #{tpu_custom_call.1} parent=1 // pred_region
      %343 = dma.done [#allocation4], 64
    $region49: #{tpu_custom_call.1} parent=1 // pred_fallthru
      _
    %344 = vsyncpa [#allocation3], 1
    %345 = vsyncpa [#allocation6], 1
    %346 = vsyncpa [#allocation4], 1

</llo_original>
